<compile_context>
chip_gen: v6e
topology: v6e:2x2x1
jax: 0.10.0
libtpu: 0.0.40
codegen_flags: <defaults>
</compile_context>

<pallas_src>
import functools

import jax
import jax.numpy as jnp
from jax.experimental import pallas as pl
from jax.experimental.pallas import tpu as pltpu

_LANE = 128
_SMOOTH = 1e-5


def _round_up(x, m):
    return (x + m - 1) // m * m


def _pick_tile_m(m_rows, n_classes, max_tile=512, vmem_budget=2 * 1024 * 1024):
    """Pick a sublane tile size (multiple of 8) for the flattened position axis."""
    # Keep one (C, tile, 128) f32 score block around `vmem_budget` bytes so the
    # double-buffered pipeline fits comfortably in scoped VMEM on all gens.
    cap = (vmem_budget // (n_classes * _LANE * 4)) // 8 * 8
    cap = max(8, min(max_tile, cap))
    if m_rows % 8 == 0 and m_rows <= cap:
        return m_rows
    if m_rows % 8 == 0:
        for t in range(cap, 7, -8):
            if m_rows % t == 0:       # divisor -> no padding of the M axis
                return t
    return min(cap, _round_up(m_rows, 8))


def _dice_sums_kernel(x_ref, t_ref, out_ref, *, n_classes, apply_softmax,
                      mask_padding):
    """Grid = (batch, position_tiles); position tiles are the reduction axis.

    x_ref:   (C, TILE_M, 128) scores/logits for one batch element, one tile.
    t_ref:   (TILE_M, 128) int32 labels (-1 marks padded positions).
    out_ref: (3*C, 8, 128) f32 per-batch partial sums, laid out as
             [intersect_0..C-1, y_sum_0..C-1, z_sum_0..C-1].  Resident in VMEM
             across all position tiles of this batch element (accumulator).
    """
    m = pl.program_id(1)

    @pl.when(m == 0)
    def _init():
        out_ref[...] = jnp.zeros_like(out_ref)

    x = x_ref[...].astype(jnp.float32)        # (C, TM, 128)
    t = t_ref[...]                            # (TM, 128) int32 (kept integer)

    if apply_softmax:
        # Channel softmax fused in-kernel: the class axis is a leading dim, so
        # max / sum over it are plain VPU ops across vregs; exp goes to the EUP.
        xmax = jnp.max(x, axis=0, keepdims=True)
        e = jnp.exp(x - xmax)
        inv = 1.0 / jnp.sum(e, axis=0, keepdims=True)   # one divide per position
        p = e * inv
    else:
        p = x

    if mask_padding:
        # Padded positions (t == -1): zero their scores so z_sum / intersect
        # ignore the values produced on padding.
        valid = (t >= 0).astype(jnp.float32)            # (TM, 128)
        p = p * valid[None]

    tile_m = p.shape[1]
    k = tile_m // 8                          # tile_m is always a multiple of 8

    for c in range(n_classes):
        pc = p[c]                                              # (TM, 128)
        oh = (t == c).astype(jnp.float32)                      # integer compare
        # Reduce only over the vreg-row axis here (pure VPU adds); the
        # cross-lane reduction happens once in the JAX epilogue.
        out_ref[0 * n_classes + c] += jnp.sum((pc * oh).reshape(k, 8, _LANE), axis=0)
        out_ref[1 * n_classes + c] += jnp.sum(oh.reshape(k, 8, _LANE), axis=0)
        out_ref[2 * n_classes + c] += jnp.sum((pc * pc).reshape(k, 8, _LANE), axis=0)


def dice_loss(inputs, target, n_classes, weight=None, softmax=False, tile_m=None):
    """JAX/Pallas equivalent of DiceLoss.forward.

    inputs: (B, C, H, W) float scores (or logits if softmax=True).
    target: (B, 1, H, W) (or (B, H, W)) integer class labels.
    """
    B, C, H, W = inputs.shape
    assert C == n_classes, "predict & target shape do not match"
    N = H * W

    x = inputs.reshape(B, C, N)                       # free reshape, no transpose
    t = target.reshape(B, -1).astype(jnp.int32)       # labels stay integer
    assert t.shape[1] == N, "predict & target shape do not match"

    m_rows = -(-N // _LANE)
    if tile_m is None:
        tile_m = _pick_tile_m(m_rows, n_classes)
    mp = _round_up(m_rows, tile_m)
    n_tot = mp * _LANE
    mask_padding = n_tot != N

    if mask_padding:
        # Padded score values are irrelevant (masked in-kernel via target == -1).
        x = jnp.pad(x, ((0, 0), (0, 0), (0, n_tot - N)))
        t = jnp.pad(t, ((0, 0), (0, n_tot - N)), constant_values=-1)

    x = x.reshape(B, C, mp, _LANE)
    t = t.reshape(B, mp, _LANE)

    grid = (B, mp // tile_m)

    kernel = functools.partial(
        _dice_sums_kernel,
        n_classes=n_classes,
        apply_softmax=bool(softmax),
        mask_padding=mask_padding,
    )

    total_pos = B * mp * _LANE
    x_bytes = n_classes * total_pos * jnp.dtype(x.dtype).itemsize
    cost = pl.CostEstimate(
        flops=int(10 * n_classes * total_pos),
        transcendentals=int(n_classes * total_pos) if softmax else 0,
        bytes_accessed=int(x_bytes + 4 * total_pos + B * 3 * n_classes * 8 * _LANE * 4),
    )

    out = pl.pallas_call(
        kernel,
        out_shape=jax.ShapeDtypeStruct((B, 3 * n_classes, 8, _LANE), jnp.float32),
        grid_spec=pltpu.PrefetchScalarGridSpec(
            num_scalar_prefetch=0,
            grid=grid,
            in_specs=[
                # (C, tile_m, 128) score tile: all classes resident per tile.
                pl.BlockSpec((None, C, tile_m, _LANE), lambda b, m: (b, 0, m, 0)),
                # (tile_m, 128) int32 target tile: fetched once per tile.
                pl.BlockSpec((None, tile_m, _LANE), lambda b, m: (b, m, 0)),
            ],
            # Per-batch accumulator block: constant across the reduction axis m.
            out_specs=pl.BlockSpec((None, 3 * n_classes, 8, _LANE),
                                   lambda b, m: (b, 0, 0, 0)),
        ),
        compiler_params=pltpu.CompilerParams(
            # Batch blocks are independent -> parallel; tile axis carries the
            # per-batch accumulator -> arbitrary (and last, as the reduction).
            dimension_semantics=("parallel", "arbitrary")),
        cost_estimate=cost,
    )(x, t)

    # Tiny epilogue: cross-lane reduce + dice formula + weighted mean over C.
    sums = out.reshape(B, 3, n_classes, 8, _LANE).sum(axis=(0, 3, 4))   # (3, C)
    intersect, y_sum, z_sum = sums[0], sums[1], sums[2]
    dice = 1.0 - (2.0 * intersect + _SMOOTH) / (z_sum + y_sum + _SMOOTH)

    if weight is None:
        w = jnp.ones((n_classes,), jnp.float32)
    else:
        w = jnp.asarray(weight, jnp.float32)
    return jnp.sum(dice * w) / n_classes


def _dice_loss_reference(inputs, target, n_classes, weight=None, softmax=False):
    """Pure-JAX reference mirroring the PyTorch module."""
    if softmax:
        inputs = jax.nn.softmax(inputs.astype(jnp.float32), axis=1)
    inputs = inputs.astype(jnp.float32)
    tgt = target.astype(jnp.float32)  # (B, 1, H, W)
    onehot = jnp.concatenate(
        [(tgt == float(i)).astype(jnp.float32) for i in range(n_classes)], axis=1)
    if weight is None:
        weight = [1.0] * n_classes
    loss = 0.0
    for i in range(n_classes):
        s = inputs[:, i]
        tt = onehot[:, i]
        intersect = jnp.sum(s * tt)
        y_sum = jnp.sum(tt * tt)
        z_sum = jnp.sum(s * s)
        dice = 1.0 - (2.0 * intersect + _SMOOTH) / (z_sum + y_sum + _SMOOTH)
        loss = loss + dice * weight[i]
    return loss / n_classes


if __name__ == "__main__":
    key = jax.random.PRNGKey(0)
    k1, k2 = jax.random.split(key)

    B, C, H, W = 2, 4, 16, 16
    logits = jax.random.normal(k1, (B, C, H, W), dtype=jnp.float32)
    target = jax.random.randint(k2, (B, 1, H, W), 0, C, dtype=jnp.int32)

    # 1) typical training call: fused softmax path
    out = dice_loss(logits, target, n_classes=C, softmax=True)
    out = jax.block_until_ready(out)
    ref = _dice_loss_reference(logits, target, n_classes=C, softmax=True)
    assert jnp.allclose(out, ref, rtol=1e-5, atol=1e-5), (out, ref)

    # 2) pre-softmaxed inputs with per-class weights
    probs = jax.nn.softmax(logits, axis=1)
    wts = [0.5, 1.0, 1.5, 2.0]
    out2 = dice_loss(probs, target, n_classes=C, weight=wts, softmax=False)
    out2 = jax.block_until_ready(out2)
    ref2 = _dice_loss_reference(probs, target, n_classes=C, weight=wts, softmax=False)
    assert jnp.allclose(out2, ref2, rtol=1e-5, atol=1e-5), (out2, ref2)

    print("KERNEL_OK")
</pallas_src>

<mosaic_0001>
module attributes {stable_mosaic.version = 11 : i64} {
  func.func @_dice_sums_kernel(%arg0: i32, %arg1: i32, %arg2: memref<1x4x8x128xf32, #tpu.memory_space<vmem>>, %arg3: memref<1x8x128xi32, #tpu.memory_space<vmem>>, %arg4: memref<1x12x8x128xf32, #tpu.memory_space<vmem>>) attributes {dimension_semantics = [#tpu.dimension_semantics<parallel>, #tpu.dimension_semantics<arbitrary>], iteration_bounds = array<i64: 2, 1>, scalar_prefetch = 0 : i64, scratch_operands = 0 : i64, tpu.core_type = #tpu.core_type<tc>, window_params = [{transform_indices = @transform_0, window_bounds = array<i64: 1, 4, 8, 128>}, {transform_indices = @transform_1, window_bounds = array<i64: 1, 8, 128>}, {transform_indices = @transform_2, window_bounds = array<i64: 1, 12, 8, 128>}]} {
    %c0_i32 = arith.constant 0 : i32
    %0 = arith.cmpi eq, %arg1, %c0_i32 : i32
    %1 = arith.extui %0 : i1 to i32
    %c0_i32_0 = arith.constant 0 : i32
    %2 = arith.cmpi ne, %1, %c0_i32_0 : i32
    scf.if %2 {
      %cst_108 = arith.constant 0.000000e+00 : f32
      %153 = vector.broadcast %cst_108 : f32 to vector<12x8x128xf32>
      %c0_109 = arith.constant 0 : index
      %c0_110 = arith.constant 0 : index
      %c0_111 = arith.constant 0 : index
      %c0_112 = arith.constant 0 : index
      %154 = vector.load %arg4[%c0_109, %c0_110, %c0_111, %c0_112] : memref<1x12x8x128xf32, #tpu.memory_space<vmem>>, vector<1x12x8x128xf32>
      %155 = vector.shape_cast %154 : vector<1x12x8x128xf32> to vector<12x8x128xf32>
      %156 = vector.shape_cast %153 : vector<12x8x128xf32> to vector<1x12x8x128xf32>
      tpu.vector_store %arg4[%c0_109, %c0_110, %c0_111, %c0_112], %156 {strides = array<i32>} : memref<1x12x8x128xf32, #tpu.memory_space<vmem>>, vector<1x12x8x128xf32>,
    } else {
    }
    %c0 = arith.constant 0 : index
    %c0_1 = arith.constant 0 : index
    %c0_2 = arith.constant 0 : index
    %c0_3 = arith.constant 0 : index
    %3 = vector.load %arg2[%c0, %c0_1, %c0_2, %c0_3] : memref<1x4x8x128xf32, #tpu.memory_space<vmem>>, vector<1x4x8x128xf32>
    %4 = vector.shape_cast %3 : vector<1x4x8x128xf32> to vector<4x8x128xf32>
    %c0_4 = arith.constant 0 : index
    %c0_5 = arith.constant 0 : index
    %c0_6 = arith.constant 0 : index
    %5 = vector.load %arg3[%c0_4, %c0_5, %c0_6] : memref<1x8x128xi32, #tpu.memory_space<vmem>>, vector<1x8x128xi32>
    %6 = vector.shape_cast %5 : vector<1x8x128xi32> to vector<8x128xi32>
    %cst = arith.constant dense<0xFF800000> : vector<8x128xf32>
    %7 = vector.multi_reduction <maximumf>, %4, %cst [0] : vector<4x8x128xf32> to vector<8x128xf32>
    %8 = vector.shape_cast %7 : vector<8x128xf32> to vector<1x8x128xf32>
    %9 = vector.broadcast %8 : vector<1x8x128xf32> to vector<4x8x128xf32>
    %10 = arith.subf %4, %9 : vector<4x8x128xf32>
    %11 = math.exp %10 : vector<4x8x128xf32>
    %cst_7 = arith.constant dense<0.000000e+00> : vector<8x128xf32>
    %12 = vector.multi_reduction <add>, %11, %cst_7 [0] : vector<4x8x128xf32> to vector<8x128xf32>
    %13 = vector.shape_cast %12 : vector<8x128xf32> to vector<1x8x128xf32>
    %cst_8 = arith.constant 1.000000e+00 : f32
    %14 = vector.broadcast %cst_8 : f32 to vector<1x8x128xf32>
    %15 = arith.divf %14, %13 : vector<1x8x128xf32>
    %16 = vector.broadcast %15 : vector<1x8x128xf32> to vector<4x8x128xf32>
    %17 = arith.mulf %11, %16 : vector<4x8x128xf32>
    %c0_i32_9 = arith.constant 0 : i32
    %18 = vector.broadcast %c0_i32_9 : i32 to vector<8x128xi32>
    %19 = arith.cmpi sge, %6, %18 : vector<8x128xi32>
    %20 = arith.extui %19 : vector<8x128xi1> to vector<8x128xi32>
    %21 = arith.sitofp %20 : vector<8x128xi32> to vector<8x128xf32>
    %22 = vector.shape_cast %21 : vector<8x128xf32> to vector<1x8x128xf32>
    %23 = vector.broadcast %22 : vector<1x8x128xf32> to vector<4x8x128xf32>
    %24 = arith.mulf %17, %23 : vector<4x8x128xf32>
    %25 = vector.extract_strided_slice %24 {offsets = [0, 0, 0], sizes = [1, 8, 128], strides = [1, 1, 1]} : vector<4x8x128xf32> to vector<1x8x128xf32>
    %26 = vector.shape_cast %25 : vector<1x8x128xf32> to vector<8x128xf32>
    %c0_i32_10 = arith.constant 0 : i32
    %27 = vector.broadcast %c0_i32_10 : i32 to vector<8x128xi32>
    %28 = arith.cmpi eq, %6, %27 : vector<8x128xi32>
    %29 = arith.extui %28 : vector<8x128xi1> to vector<8x128xi32>
    %30 = arith.sitofp %29 : vector<8x128xi32> to vector<8x128xf32>
    %c0_11 = arith.constant 0 : index
    %c0_12 = arith.constant 0 : index
    %c0_13 = arith.constant 0 : index
    %c0_14 = arith.constant 0 : index
    %31 = vector.load %arg4[%c0_11, %c0_12, %c0_13, %c0_14] : memref<1x12x8x128xf32, #tpu.memory_space<vmem>>, vector<1x1x8x128xf32>
    %32 = vector.shape_cast %31 : vector<1x1x8x128xf32> to vector<8x128xf32>
    %33 = arith.mulf %26, %30 : vector<8x128xf32>
    %34 = vector.shape_cast %33 : vector<8x128xf32> to vector<1x8x128xf32>
    %cst_15 = arith.constant dense<0.000000e+00> : vector<8x128xf32>
    %35 = vector.multi_reduction <add>, %34, %cst_15 [0] : vector<1x8x128xf32> to vector<8x128xf32>
    %36 = arith.addf %32, %35 : vector<8x128xf32>
    %c0_16 = arith.constant 0 : index
    %c0_17 = arith.constant 0 : index
    %c0_18 = arith.constant 0 : index
    %c0_19 = arith.constant 0 : index
    %37 = vector.load %arg4[%c0_16, %c0_17, %c0_18, %c0_19] : memref<1x12x8x128xf32, #tpu.memory_space<vmem>>, vector<1x1x8x128xf32>
    %38 = vector.shape_cast %37 : vector<1x1x8x128xf32> to vector<8x128xf32>
    %39 = vector.shape_cast %36 : vector<8x128xf32> to vector<1x1x8x128xf32>
    tpu.vector_store %arg4[%c0_16, %c0_17, %c0_18, %c0_19], %39 {strides = array<i32>} : memref<1x12x8x128xf32, #tpu.memory_space<vmem>>, vector<1x1x8x128xf32>,
    %c0_20 = arith.constant 0 : index
    %c4 = arith.constant 4 : index
    %c0_21 = arith.constant 0 : index
    %c0_22 = arith.constant 0 : index
    %40 = vector.load %arg4[%c0_20, %c4, %c0_21, %c0_22] : memref<1x12x8x128xf32, #tpu.memory_space<vmem>>, vector<1x1x8x128xf32>
    %41 = vector.shape_cast %40 : vector<1x1x8x128xf32> to vector<8x128xf32>
    %42 = vector.shape_cast %30 : vector<8x128xf32> to vector<1x8x128xf32>
    %cst_23 = arith.constant dense<0.000000e+00> : vector<8x128xf32>
    %43 = vector.multi_reduction <add>, %42, %cst_23 [0] : vector<1x8x128xf32> to vector<8x128xf32>
    %44 = arith.addf %41, %43 : vector<8x128xf32>
    %c0_24 = arith.constant 0 : index
    %c4_25 = arith.constant 4 : index
    %c0_26 = arith.constant 0 : index
    %c0_27 = arith.constant 0 : index
    %45 = vector.load %arg4[%c0_24, %c4_25, %c0_26, %c0_27] : memref<1x12x8x128xf32, #tpu.memory_space<vmem>>, vector<1x1x8x128xf32>
    %46 = vector.shape_cast %45 : vector<1x1x8x128xf32> to vector<8x128xf32>
    %47 = vector.shape_cast %44 : vector<8x128xf32> to vector<1x1x8x128xf32>
    tpu.vector_store %arg4[%c0_24, %c4_25, %c0_26, %c0_27], %47 {strides = array<i32>} : memref<1x12x8x128xf32, #tpu.memory_space<vmem>>, vector<1x1x8x128xf32>,
    %c0_28 = arith.constant 0 : index
    %c8 = arith.constant 8 : index
    %c0_29 = arith.constant 0 : index
    %c0_30 = arith.constant 0 : index
    %48 = vector.load %arg4[%c0_28, %c8, %c0_29, %c0_30] : memref<1x12x8x128xf32, #tpu.memory_space<vmem>>, vector<1x1x8x128xf32>
    %49 = vector.shape_cast %48 : vector<1x1x8x128xf32> to vector<8x128xf32>
    %50 = arith.mulf %26, %26 : vector<8x128xf32>
    %51 = vector.shape_cast %50 : vector<8x128xf32> to vector<1x8x128xf32>
    %cst_31 = arith.constant dense<0.000000e+00> : vector<8x128xf32>
    %52 = vector.multi_reduction <add>, %51, %cst_31 [0] : vector<1x8x128xf32> to vector<8x128xf32>
    %53 = arith.addf %49, %52 : vector<8x128xf32>
    %c0_32 = arith.constant 0 : index
    %c8_33 = arith.constant 8 : index
    %c0_34 = arith.constant 0 : index
    %c0_35 = arith.constant 0 : index
    %54 = vector.load %arg4[%c0_32, %c8_33, %c0_34, %c0_35] : memref<1x12x8x128xf32, #tpu.memory_space<vmem>>, vector<1x1x8x128xf32>
    %55 = vector.shape_cast %54 : vector<1x1x8x128xf32> to vector<8x128xf32>
    %56 = vector.shape_cast %53 : vector<8x128xf32> to vector<1x1x8x128xf32>
    tpu.vector_store %arg4[%c0_32, %c8_33, %c0_34, %c0_35], %56 {strides = array<i32>} : memref<1x12x8x128xf32, #tpu.memory_space<vmem>>, vector<1x1x8x128xf32>,
    %57 = vector.extract_strided_slice %24 {offsets = [1, 0, 0], sizes = [1, 8, 128], strides = [1, 1, 1]} : vector<4x8x128xf32> to vector<1x8x128xf32>
    %58 = vector.shape_cast %57 : vector<1x8x128xf32> to vector<8x128xf32>
    %c1_i32 = arith.constant 1 : i32
    %59 = vector.broadcast %c1_i32 : i32 to vector<8x128xi32>
    %60 = arith.cmpi eq, %6, %59 : vector<8x128xi32>
    %61 = arith.extui %60 : vector<8x128xi1> to vector<8x128xi32>
    %62 = arith.sitofp %61 : vector<8x128xi32> to vector<8x128xf32>
    %c0_36 = arith.constant 0 : index
    %c1 = arith.constant 1 : index
    %c0_37 = arith.constant 0 : index
    %c0_38 = arith.constant 0 : index
    %63 = vector.load %arg4[%c0_36, %c1, %c0_37, %c0_38] : memref<1x12x8x128xf32, #tpu.memory_space<vmem>>, vector<1x1x8x128xf32>
    %64 = vector.shape_cast %63 : vector<1x1x8x128xf32> to vector<8x128xf32>
    %65 = arith.mulf %58, %62 : vector<8x128xf32>
    %66 = vector.shape_cast %65 : vector<8x128xf32> to vector<1x8x128xf32>
    %cst_39 = arith.constant dense<0.000000e+00> : vector<8x128xf32>
    %67 = vector.multi_reduction <add>, %66, %cst_39 [0] : vector<1x8x128xf32> to vector<8x128xf32>
    %68 = arith.addf %64, %67 : vector<8x128xf32>
    %c0_40 = arith.constant 0 : index
    %c1_41 = arith.constant 1 : index
    %c0_42 = arith.constant 0 : index
    %c0_43 = arith.constant 0 : index
    %69 = vector.load %arg4[%c0_40, %c1_41, %c0_42, %c0_43] : memref<1x12x8x128xf32, #tpu.memory_space<vmem>>, vector<1x1x8x128xf32>
    %70 = vector.shape_cast %69 : vector<1x1x8x128xf32> to vector<8x128xf32>
    %71 = vector.shape_cast %68 : vector<8x128xf32> to vector<1x1x8x128xf32>
    tpu.vector_store %arg4[%c0_40, %c1_41, %c0_42, %c0_43], %71 {strides = array<i32>} : memref<1x12x8x128xf32, #tpu.memory_space<vmem>>, vector<1x1x8x128xf32>,
    %c0_44 = arith.constant 0 : index
    %c5 = arith.constant 5 : index
    %c0_45 = arith.constant 0 : index
    %c0_46 = arith.constant 0 : index
    %72 = vector.load %arg4[%c0_44, %c5, %c0_45, %c0_46] : memref<1x12x8x128xf32, #tpu.memory_space<vmem>>, vector<1x1x8x128xf32>
    %73 = vector.shape_cast %72 : vector<1x1x8x128xf32> to vector<8x128xf32>
    %74 = vector.shape_cast %62 : vector<8x128xf32> to vector<1x8x128xf32>
    %cst_47 = arith.constant dense<0.000000e+00> : vector<8x128xf32>
    %75 = vector.multi_reduction <add>, %74, %cst_47 [0] : vector<1x8x128xf32> to vector<8x128xf32>
    %76 = arith.addf %73, %75 : vector<8x128xf32>
    %c0_48 = arith.constant 0 : index
    %c5_49 = arith.constant 5 : index
    %c0_50 = arith.constant 0 : index
    %c0_51 = arith.constant 0 : index
    %77 = vector.load %arg4[%c0_48, %c5_49, %c0_50, %c0_51] : memref<1x12x8x128xf32, #tpu.memory_space<vmem>>, vector<1x1x8x128xf32>
    %78 = vector.shape_cast %77 : vector<1x1x8x128xf32> to vector<8x128xf32>
    %79 = vector.shape_cast %76 : vector<8x128xf32> to vector<1x1x8x128xf32>
    tpu.vector_store %arg4[%c0_48, %c5_49, %c0_50, %c0_51], %79 {strides = array<i32>} : memref<1x12x8x128xf32, #tpu.memory_space<vmem>>, vector<1x1x8x128xf32>,
    %c0_52 = arith.constant 0 : index
    %c9 = arith.constant 9 : index
    %c0_53 = arith.constant 0 : index
    %c0_54 = arith.constant 0 : index
    %80 = vector.load %arg4[%c0_52, %c9, %c0_53, %c0_54] : memref<1x12x8x128xf32, #tpu.memory_space<vmem>>, vector<1x1x8x128xf32>
    %81 = vector.shape_cast %80 : vector<1x1x8x128xf32> to vector<8x128xf32>
    %82 = arith.mulf %58, %58 : vector<8x128xf32>
    %83 = vector.shape_cast %82 : vector<8x128xf32> to vector<1x8x128xf32>
    %cst_55 = arith.constant dense<0.000000e+00> : vector<8x128xf32>
    %84 = vector.multi_reduction <add>, %83, %cst_55 [0] : vector<1x8x128xf32> to vector<8x128xf32>
    %85 = arith.addf %81, %84 : vector<8x128xf32>
    %c0_56 = arith.constant 0 : index
    %c9_57 = arith.constant 9 : index
    %c0_58 = arith.constant 0 : index
    %c0_59 = arith.constant 0 : index
    %86 = vector.load %arg4[%c0_56, %c9_57, %c0_58, %c0_59] : memref<1x12x8x128xf32, #tpu.memory_space<vmem>>, vector<1x1x8x128xf32>
    %87 = vector.shape_cast %86 : vector<1x1x8x128xf32> to vector<8x128xf32>
    %88 = vector.shape_cast %85 : vector<8x128xf32> to vector<1x1x8x128xf32>
    tpu.vector_store %arg4[%c0_56, %c9_57, %c0_58, %c0_59], %88 {strides = array<i32>} : memref<1x12x8x128xf32, #tpu.memory_space<vmem>>, vector<1x1x8x128xf32>,
    %89 = vector.extract_strided_slice %24 {offsets = [2, 0, 0], sizes = [1, 8, 128], strides = [1, 1, 1]} : vector<4x8x128xf32> to vector<1x8x128xf32>
    %90 = vector.shape_cast %89 : vector<1x8x128xf32> to vector<8x128xf32>
    %c2_i32 = arith.constant 2 : i32
    %91 = vector.broadcast %c2_i32 : i32 to vector<8x128xi32>
    %92 = arith.cmpi eq, %6, %91 : vector<8x128xi32>
    %93 = arith.extui %92 : vector<8x128xi1> to vector<8x128xi32>
    %94 = arith.sitofp %93 : vector<8x128xi32> to vector<8x128xf32>
    %c0_60 = arith.constant 0 : index
    %c2 = arith.constant 2 : index
    %c0_61 = arith.constant 0 : index
    %c0_62 = arith.constant 0 : index
    %95 = vector.load %arg4[%c0_60, %c2, %c0_61, %c0_62] : memref<1x12x8x128xf32, #tpu.memory_space<vmem>>, vector<1x1x8x128xf32>
    %96 = vector.shape_cast %95 : vector<1x1x8x128xf32> to vector<8x128xf32>
    %97 = arith.mulf %90, %94 : vector<8x128xf32>
    %98 = vector.shape_cast %97 : vector<8x128xf32> to vector<1x8x128xf32>
    %cst_63 = arith.constant dense<0.000000e+00> : vector<8x128xf32>
    %99 = vector.multi_reduction <add>, %98, %cst_63 [0] : vector<1x8x128xf32> to vector<8x128xf32>
    %100 = arith.addf %96, %99 : vector<8x128xf32>
    %c0_64 = arith.constant 0 : index
    %c2_65 = arith.constant 2 : index
    %c0_66 = arith.constant 0 : index
    %c0_67 = arith.constant 0 : index
    %101 = vector.load %arg4[%c0_64, %c2_65, %c0_66, %c0_67] : memref<1x12x8x128xf32, #tpu.memory_space<vmem>>, vector<1x1x8x128xf32>
    %102 = vector.shape_cast %101 : vector<1x1x8x128xf32> to vector<8x128xf32>
    %103 = vector.shape_cast %100 : vector<8x128xf32> to vector<1x1x8x128xf32>
    tpu.vector_store %arg4[%c0_64, %c2_65, %c0_66, %c0_67], %103 {strides = array<i32>} : memref<1x12x8x128xf32, #tpu.memory_space<vmem>>, vector<1x1x8x128xf32>,
    %c0_68 = arith.constant 0 : index
    %c6 = arith.constant 6 : index
    %c0_69 = arith.constant 0 : index
    %c0_70 = arith.constant 0 : index
    %104 = vector.load %arg4[%c0_68, %c6, %c0_69, %c0_70] : memref<1x12x8x128xf32, #tpu.memory_space<vmem>>, vector<1x1x8x128xf32>
    %105 = vector.shape_cast %104 : vector<1x1x8x128xf32> to vector<8x128xf32>
    %106 = vector.shape_cast %94 : vector<8x128xf32> to vector<1x8x128xf32>
    %cst_71 = arith.constant dense<0.000000e+00> : vector<8x128xf32>
    %107 = vector.multi_reduction <add>, %106, %cst_71 [0] : vector<1x8x128xf32> to vector<8x128xf32>
    %108 = arith.addf %105, %107 : vector<8x128xf32>
    %c0_72 = arith.constant 0 : index
    %c6_73 = arith.constant 6 : index
    %c0_74 = arith.constant 0 : index
    %c0_75 = arith.constant 0 : index
    %109 = vector.load %arg4[%c0_72, %c6_73, %c0_74, %c0_75] : memref<1x12x8x128xf32, #tpu.memory_space<vmem>>, vector<1x1x8x128xf32>
    %110 = vector.shape_cast %109 : vector<1x1x8x128xf32> to vector<8x128xf32>
    %111 = vector.shape_cast %108 : vector<8x128xf32> to vector<1x1x8x128xf32>
    tpu.vector_store %arg4[%c0_72, %c6_73, %c0_74, %c0_75], %111 {strides = array<i32>} : memref<1x12x8x128xf32, #tpu.memory_space<vmem>>, vector<1x1x8x128xf32>,
    %c0_76 = arith.constant 0 : index
    %c10 = arith.constant 10 : index
    %c0_77 = arith.constant 0 : index
    %c0_78 = arith.constant 0 : index
    %112 = vector.load %arg4[%c0_76, %c10, %c0_77, %c0_78] : memref<1x12x8x128xf32, #tpu.memory_space<vmem>>, vector<1x1x8x128xf32>
    %113 = vector.shape_cast %112 : vector<1x1x8x128xf32> to vector<8x128xf32>
    %114 = arith.mulf %90, %90 : vector<8x128xf32>
    %115 = vector.shape_cast %114 : vector<8x128xf32> to vector<1x8x128xf32>
    %cst_79 = arith.constant dense<0.000000e+00> : vector<8x128xf32>
    %116 = vector.multi_reduction <add>, %115, %cst_79 [0] : vector<1x8x128xf32> to vector<8x128xf32>
    %117 = arith.addf %113, %116 : vector<8x128xf32>
    %c0_80 = arith.constant 0 : index
    %c10_81 = arith.constant 10 : index
    %c0_82 = arith.constant 0 : index
    %c0_83 = arith.constant 0 : index
    %118 = vector.load %arg4[%c0_80, %c10_81, %c0_82, %c0_83] : memref<1x12x8x128xf32, #tpu.memory_space<vmem>>, vector<1x1x8x128xf32>
    %119 = vector.shape_cast %118 : vector<1x1x8x128xf32> to vector<8x128xf32>
    %120 = vector.shape_cast %117 : vector<8x128xf32> to vector<1x1x8x128xf32>
    tpu.vector_store %arg4[%c0_80, %c10_81, %c0_82, %c0_83], %120 {strides = array<i32>} : memref<1x12x8x128xf32, #tpu.memory_space<vmem>>, vector<1x1x8x128xf32>,
    %121 = vector.extract_strided_slice %24 {offsets = [3, 0, 0], sizes = [1, 8, 128], strides = [1, 1, 1]} : vector<4x8x128xf32> to vector<1x8x128xf32>
    %122 = vector.shape_cast %121 : vector<1x8x128xf32> to vector<8x128xf32>
    %c3_i32 = arith.constant 3 : i32
    %123 = vector.broadcast %c3_i32 : i32 to vector<8x128xi32>
    %124 = arith.cmpi eq, %6, %123 : vector<8x128xi32>
    %125 = arith.extui %124 : vector<8x128xi1> to vector<8x128xi32>
    %126 = arith.sitofp %125 : vector<8x128xi32> to vector<8x128xf32>
    %c0_84 = arith.constant 0 : index
    %c3 = arith.constant 3 : index
    %c0_85 = arith.constant 0 : index
    %c0_86 = arith.constant 0 : index
    %127 = vector.load %arg4[%c0_84, %c3, %c0_85, %c0_86] : memref<1x12x8x128xf32, #tpu.memory_space<vmem>>, vector<1x1x8x128xf32>
    %128 = vector.shape_cast %127 : vector<1x1x8x128xf32> to vector<8x128xf32>
    %129 = arith.mulf %122, %126 : vector<8x128xf32>
    %130 = vector.shape_cast %129 : vector<8x128xf32> to vector<1x8x128xf32>
    %cst_87 = arith.constant dense<0.000000e+00> : vector<8x128xf32>
    %131 = vector.multi_reduction <add>, %130, %cst_87 [0] : vector<1x8x128xf32> to vector<8x128xf32>
    %132 = arith.addf %128, %131 : vector<8x128xf32>
    %c0_88 = arith.constant 0 : index
    %c3_89 = arith.constant 3 : index
    %c0_90 = arith.constant 0 : index
    %c0_91 = arith.constant 0 : index
    %133 = vector.load %arg4[%c0_88, %c3_89, %c0_90, %c0_91] : memref<1x12x8x128xf32, #tpu.memory_space<vmem>>, vector<1x1x8x128xf32>
    %134 = vector.shape_cast %133 : vector<1x1x8x128xf32> to vector<8x128xf32>
    %135 = vector.shape_cast %132 : vector<8x128xf32> to vector<1x1x8x128xf32>
    tpu.vector_store %arg4[%c0_88, %c3_89, %c0_90, %c0_91], %135 {strides = array<i32>} : memref<1x12x8x128xf32, #tpu.memory_space<vmem>>, vector<1x1x8x128xf32>,
    %c0_92 = arith.constant 0 : index
    %c7 = arith.constant 7 : index
    %c0_93 = arith.constant 0 : index
    %c0_94 = arith.constant 0 : index
    %136 = vector.load %arg4[%c0_92, %c7, %c0_93, %c0_94] : memref<1x12x8x128xf32, #tpu.memory_space<vmem>>, vector<1x1x8x128xf32>
    %137 = vector.shape_cast %136 : vector<1x1x8x128xf32> to vector<8x128xf32>
    %138 = vector.shape_cast %126 : vector<8x128xf32> to vector<1x8x128xf32>
    %cst_95 = arith.constant dense<0.000000e+00> : vector<8x128xf32>
    %139 = vector.multi_reduction <add>, %138, %cst_95 [0] : vector<1x8x128xf32> to vector<8x128xf32>
    %140 = arith.addf %137, %139 : vector<8x128xf32>
    %c0_96 = arith.constant 0 : index
    %c7_97 = arith.constant 7 : index
    %c0_98 = arith.constant 0 : index
    %c0_99 = arith.constant 0 : index
    %141 = vector.load %arg4[%c0_96, %c7_97, %c0_98, %c0_99] : memref<1x12x8x128xf32, #tpu.memory_space<vmem>>, vector<1x1x8x128xf32>
    %142 = vector.shape_cast %141 : vector<1x1x8x128xf32> to vector<8x128xf32>
    %143 = vector.shape_cast %140 : vector<8x128xf32> to vector<1x1x8x128xf32>
    tpu.vector_store %arg4[%c0_96, %c7_97, %c0_98, %c0_99], %143 {strides = array<i32>} : memref<1x12x8x128xf32, #tpu.memory_space<vmem>>, vector<1x1x8x128xf32>,
    %c0_100 = arith.constant 0 : index
    %c11 = arith.constant 11 : index
    %c0_101 = arith.constant 0 : index
    %c0_102 = arith.constant 0 : index
    %144 = vector.load %arg4[%c0_100, %c11, %c0_101, %c0_102] : memref<1x12x8x128xf32, #tpu.memory_space<vmem>>, vector<1x1x8x128xf32>
    %145 = vector.shape_cast %144 : vector<1x1x8x128xf32> to vector<8x128xf32>
    %146 = arith.mulf %122, %122 : vector<8x128xf32>
    %147 = vector.shape_cast %146 : vector<8x128xf32> to vector<1x8x128xf32>
    %cst_103 = arith.constant dense<0.000000e+00> : vector<8x128xf32>
    %148 = vector.multi_reduction <add>, %147, %cst_103 [0] : vector<1x8x128xf32> to vector<8x128xf32>
    %149 = arith.addf %145, %148 : vector<8x128xf32>
    %c0_104 = arith.constant 0 : index
    %c11_105 = arith.constant 11 : index
    %c0_106 = arith.constant 0 : index
    %c0_107 = arith.constant 0 : index
    %150 = vector.load %arg4[%c0_104, %c11_105, %c0_106, %c0_107] : memref<1x12x8x128xf32, #tpu.memory_space<vmem>>, vector<1x1x8x128xf32>
    %151 = vector.shape_cast %150 : vector<1x1x8x128xf32> to vector<8x128xf32>
    %152 = vector.shape_cast %149 : vector<8x128xf32> to vector<1x1x8x128xf32>
    tpu.vector_store %arg4[%c0_104, %c11_105, %c0_106, %c0_107], %152 {strides = array<i32>} : memref<1x12x8x128xf32, #tpu.memory_space<vmem>>, vector<1x1x8x128xf32>,
    return
  }
  func.func @transform_0(%arg0: i32, %arg1: i32) -> (i32, i32, i32, i32) {
    %c0_i32 = arith.constant 0 : i32
    %c0_i32_0 = arith.constant 0 : i32
    %c0_i32_1 = arith.constant 0 : i32
    return %arg0, %c0_i32, %arg1, %c0_i32_0 : i32, i32, i32, i32
  }
  func.func @transform_1(%arg0: i32, %arg1: i32) -> (i32, i32, i32) {
    %c0_i32 = arith.constant 0 : i32
    %c0_i32_0 = arith.constant 0 : i32
    return %arg0, %arg1, %c0_i32 : i32, i32, i32
  }
  func.func @transform_2(%arg0: i32, %arg1: i32) -> (i32, i32, i32, i32) {
    %c0_i32 = arith.constant 0 : i32
    %c0_i32_0 = arith.constant 0 : i32
    %c0_i32_1 = arith.constant 0 : i32
    %c0_i32_2 = arith.constant 0 : i32
    return %arg0, %c0_i32, %c0_i32_0, %c0_i32_1 : i32, i32, i32, i32
  }
}

</mosaic_0001>

<llo_original>
// kernel: tpu_custom_call.1
$region0: #{tpu_custom_call.1}
  #allocation0 [shape = 'u32[]', space=smem, size = 0x4, offset = 0x4, fixed_abs, tag = 'smem constant byte address 0x4 - core index']
  #allocation1 [shape = 'u32[144,128]{1,0:T(1,128)}', space=vmem, size = 0x12000, scoped, tag = 'internal scratch']
  %s0 = inlined_call_operand.hbm [shape: f32[2,4,8,128], index: 0, kind: input, shape index: {}]
  %s1 = inlined_call_operand.hbm [shape: s32[2,8,128], index: 1, kind: input, shape index: {}]
  %s2 = inlined_call_operand.hbm [shape: f32[2,12,8,128], index: 2, kind: output, shape index: {}]
  %s3 = sld [smem:[#allocation0]]
  $region53: #{tpu_custom_call.1} parent=0
    _
  %s5 = ssub.s32 1, %s3
  %s6 = scalar_select 0, %s5, %s3
  $region1: #{tpu_custom_call.1} parent=0
    #allocation2 [shape = 'u8[32768]{0}', space=vmem, size = 0x8000, scoped, tag = 'input window, operand 0']
    #allocation3 [shape = 's32[2]{0}', space=sflag, size = 0x8, scoped, tag = 'scoped memory for tpu_custom_call.1']
    #allocation4 [shape = 's32[2]{0}', space=sflag, size = 0x8, scoped, tag = 'scoped memory for tpu_custom_call.1']
    #allocation5 [shape = 'u8[8192]{0}', space=vmem, size = 0x2000, scoped, tag = 'input window, operand 1']
    #allocation6 [shape = 's32[2]{0}', space=sflag, size = 0x8, scoped, tag = 'scoped memory for tpu_custom_call.1']
    #allocation7 [shape = 'u8[98304]{0}', space=vmem, size = 0x18000, scoped, tag = 'output window, operand 0']
    %7 = vsyncpa [#allocation3], 0
    %s8 = scalar_lea.sflag [#allocation3], 1
    %9 = vsyncpa %s8, 0
    %10 = vsyncpa [#allocation6], 0
    %s11 = scalar_lea.sflag [#allocation6], 1
    %12 = vsyncpa %s11, 0
    %13 = vsyncpa [#allocation4], 0
    %s14 = scalar_lea.sflag [#allocation4], 1
    %15 = vsyncpa %s14, 0
    loop: start=0, step=1, limit=4
    $region2: #{tpu_custom_call.1} parent=1 // loop_pre_header
      _
    $region3: #{tpu_custom_call.1} parent=1 // loop_header
      %s17 = sphi 0, %s21
      %p18 = scmp.ge.s32.totalorder %s17, 4
      %s24 = sphi 0, %s36
      %s25 = sphi 0, %s32
      %s26 = sphi 0, %s24
      %s27 = sphi 0, %s25
      %s28 = sphi 0, %s26
      %s29 = sphi 0, %s27
      %s41 = sphi 0, %s43
      %s44 = sphi 0, %s41
      %s45 = sphi 0, %s44
      %s61 = sphi 0, %s45
      %s69 = sphi 0, %s71
      %s72 = sphi 0, %s69
      %s73 = sphi 0, %s72
      %s89 = sphi 0, %s73
      %s95 = sphi 0, %s97
      %s98 = sphi 0, %s95
      %s99 = sphi 0, %s98
      %s115 = sphi 0, %s99
    $region4: #{tpu_custom_call.1} parent=1 // loop_header_branch
      %20 = sbr.rel (%p18) target = $region8
    $region5: #{tpu_custom_call.1} parent=1 // loop_body
      %s22 = ssub.s32 %s17, 1
      %s23 = ssub.s32 %s17, 2
      %s30 = sadd.s32 1, %s25
      %p31 = scmp.ge.s32.totalorder %s30, 1
      %s32 = scalar_select %p31, 0, %s30
      %s33 = sadd.s32 1, %s24
      %s34 = scalar_select %p31, %s33, %s24
      %p35 = scmp.ge.s32.totalorder %s34, 2
      %s36 = scalar_select %p35, 0, %s34
      %s37 = ssub.s32 %s24, %s36
      %s38 = ssub.s32 %s25, %s32
      %s39 = sor.u32 %s37, %s38
      %p40 = scmp.eq.s32.totalorder %s39, 0
      %s42 = sadd.s32 %s41, 1
      %s43 = scalar_select %p40, %s41, %s42
      %p46 = pneg %p40
      %p47 = scmp.eq.s32.totalorder %s17, 1
      %p48 = por %p46, %p47
      %p49 = scmp.ne.s32.totalorder %s41, %s44
      %p50 = scmp.eq.s32.totalorder %s17, 0
      %p51 = por %p49, %p50
      %p52 = scmp.ne.s32.totalorder %s41, %s44
      %p53 = scmp.eq.s32.totalorder %s22, 1
      %p54 = por %p52, %p53
      %p55 = scmp.ne.s32.totalorder %s44, %s45
      %p56 = scmp.eq.s32.totalorder %s22, 0
      %p57 = por %p55, %p56
      %p58 = scmp.ne.s32.totalorder %s44, %s45
      %p59 = scmp.eq.s32.totalorder %s23, 1
      %p60 = por %p58, %p59
      %p62 = scmp.ne.s32.totalorder %s45, %s61
      %p63 = scmp.eq.s32.totalorder %s23, 0
      %p64 = por %p62, %p63
      %s65 = ssub.s32 %s24, %s36
      %s66 = ssub.s32 %s25, %s32
      %s67 = sor.u32 %s65, %s66
      %p68 = scmp.eq.s32.totalorder %s67, 0
      %s70 = sadd.s32 %s69, 1
      %s71 = scalar_select %p68, %s69, %s70
      %p74 = pneg %p68
      %p75 = scmp.eq.s32.totalorder %s17, 1
      %p76 = por %p74, %p75
      %p77 = scmp.ne.s32.totalorder %s69, %s72
      %p78 = scmp.eq.s32.totalorder %s17, 0
      %p79 = por %p77, %p78
      %p80 = scmp.ne.s32.totalorder %s69, %s72
      %p81 = scmp.eq.s32.totalorder %s22, 1
      %p82 = por %p80, %p81
      %p83 = scmp.ne.s32.totalorder %s72, %s73
      %p84 = scmp.eq.s32.totalorder %s22, 0
      %p85 = por %p83, %p84
      %p86 = scmp.ne.s32.totalorder %s72, %s73
      %p87 = scmp.eq.s32.totalorder %s23, 1
      %p88 = por %p86, %p87
      %p90 = scmp.ne.s32.totalorder %s73, %s89
      %p91 = scmp.eq.s32.totalorder %s23, 0
      %p92 = por %p90, %p91
      %s93 = ssub.s32 %s24, %s36
      %p94 = scmp.eq.s32.totalorder %s93, 0
      %s96 = sadd.s32 %s95, 1
      %s97 = scalar_select %p94, %s95, %s96
      %p100 = pneg %p94
      %p101 = scmp.eq.s32.totalorder %s17, 1
      %p102 = por %p100, %p101
      %p103 = scmp.ne.s32.totalorder %s95, %s98
      %p104 = scmp.eq.s32.totalorder %s17, 0
      %p105 = por %p103, %p104
      %p106 = scmp.ne.s32.totalorder %s95, %s98
      %p107 = scmp.eq.s32.totalorder %s22, 1
      %p108 = por %p106, %p107
      %p109 = scmp.ne.s32.totalorder %s98, %s99
      %p110 = scmp.eq.s32.totalorder %s22, 0
      %p111 = por %p109, %p110
      %p112 = scmp.ne.s32.totalorder %s98, %s99
      %p113 = scmp.eq.s32.totalorder %s23, 1
      %p114 = por %p112, %p113
      %p116 = scmp.ne.s32.totalorder %s99, %s115
      %p117 = scmp.eq.s32.totalorder %s23, 0
      %p118 = por %p116, %p117
      %p119 = scmp.le.s32.totalorder 1, %s17
      %p120 = scmp.lt.s32.totalorder %s17, 3
      %p121 = pnand %p119, %p120
      %p122 = pneg %p121
      // Predicated region
      $region9: #{tpu_custom_call.1} parent=5 // pred_check
        _
      $region10: #{tpu_custom_call.1} parent=5 // pred_check_branch
        %124 = sbr.rel (%p121) target = $region12
      $region11: #{tpu_custom_call.1} parent=5 // pred_region
        %s125 = ssub.s32 %s17, 1
      $region12: #{tpu_custom_call.1} parent=5 // pred_fallthru
        _
      %p126 = scmp.lt.s32.totalorder %s17, 2
      // Predicated region
      $region13: #{tpu_custom_call.1} parent=5 // pred_check
        %p127 = pneg %p126
      $region14: #{tpu_custom_call.1} parent=5 // pred_check_branch
        %129 = sbr.rel (%p127) target = $region16
      $region15: #{tpu_custom_call.1} parent=5 // pred_region
        // Predicated region
        $region17: #{tpu_custom_call.1} parent=15 // pred_check
          %p130 = pneg %p51
        $region18: #{tpu_custom_call.1} parent=15 // pred_check_branch
          %132 = sbr.rel (%p130) target = $region20
        $region19: #{tpu_custom_call.1} parent=15 // pred_region
          %s133 = sand.u32 %s41, 1
          %s134 = scalar_lea.sflag [#allocation3], %s133
          %s135 = sand.u32 %s41, 1
          %s136 = smul.addr %s135, 32
          %s137 = scalar_lea.vmem [#allocation2], %s136
          %s139 = ssub.s32 512, 512
          %140 = vsyncadd %s134, %s139
          %s141 = smul.addr %s24, 4
          %s142 = sadd.s32 %s25, %s141
          %s143 = smul.addr %s142, 128
          %s144 = scalar_lea.hbm %s0, %s143
          %s145 = sshll.u32 %s137, 4
          %s146 = int_to_ptr.vmem [resolvable:$true] %s145
          %151 = dma.hbm_to_vmem [thread:$0]  %s144, 512, %s146, %s134, 128, 128, 8
        $region20: #{tpu_custom_call.1} parent=15 // pred_fallthru
          _
        // Predicated region
        $region21: #{tpu_custom_call.1} parent=15 // pred_check
          %p152 = pneg %p79
        $region22: #{tpu_custom_call.1} parent=15 // pred_check_branch
          %154 = sbr.rel (%p152) target = $region24
        $region23: #{tpu_custom_call.1} parent=15 // pred_region
          %s155 = sand.u32 %s69, 1
          %s156 = scalar_lea.sflag [#allocation6], %s155
          %s157 = sand.u32 %s69, 1
          %s158 = smul.addr %s157, 8
          %s159 = scalar_lea.vmem [#allocation5], %s158
          %s161 = ssub.s32 128, 128
          %162 = vsyncadd %s156, %s161
          %s163 = sadd.s32 %s25, %s24
          %s164 = smul.addr %s163, 128
          %s165 = scalar_lea.hbm %s1, %s164
          %s167 = sshll.u32 %s159, 4
          %s168 = int_to_ptr.vmem [resolvable:$true] %s167
          %170 = dma.hbm_to_vmem [thread:$0]  %s165, 128, %s168, %s156
        $region24: #{tpu_custom_call.1} parent=15 // pred_fallthru
          _
      $region16: #{tpu_custom_call.1} parent=5 // pred_fallthru
        _
      %p171 = scmp.le.s32.totalorder 1, %s17
      %p172 = scmp.lt.s32.totalorder %s17, 3
      %p173 = pnand %p171, %p172
      %p174 = pneg %p173
      // Predicated region
      $region25: #{tpu_custom_call.1} parent=5 // pred_check
        _
      $region26: #{tpu_custom_call.1} parent=5 // pred_check_branch
        %176 = sbr.rel (%p173) target = $region28
      $region27: #{tpu_custom_call.1} parent=5 // pred_region
        %s177 = ssub.s32 %s17, 1
        %s178 = sand.u32 %s44, 1
        %s179 = scalar_lea.sflag [#allocation3], %s178
        %s180 = sand.u32 %s44, 1
        %s181 = smul.addr %s180, 32
        %s182 = scalar_lea.vmem [#allocation2], %s181
        // Predicated region
        $region29: #{tpu_custom_call.1} parent=27 // pred_check
          %p183 = pneg %p57
        $region30: #{tpu_custom_call.1} parent=27 // pred_check_branch
          %185 = sbr.rel (%p183) target = $region32
        $region31: #{tpu_custom_call.1} parent=27 // pred_region
          %186 = dma.done %s179, 512
        $region32: #{tpu_custom_call.1} parent=27 // pred_fallthru
          _
        %s187 = sand.u32 %s72, 1
        %s188 = scalar_lea.sflag [#allocation6], %s187
        %s189 = sand.u32 %s72, 1
        %s190 = smul.addr %s189, 8
        %s191 = scalar_lea.vmem [#allocation5], %s190
        // Predicated region
        $region33: #{tpu_custom_call.1} parent=27 // pred_check
          %p192 = pneg %p85
        $region34: #{tpu_custom_call.1} parent=27 // pred_check_branch
          %194 = sbr.rel (%p192) target = $region36
        $region35: #{tpu_custom_call.1} parent=27 // pred_region
          %195 = dma.done %s188, 128
        $region36: #{tpu_custom_call.1} parent=27 // pred_fallthru
          _
        %s196 = sand.u32 %s44, 1
        %s197 = scalar_lea.sflag [#allocation3], %s196
        %s198 = sand.u32 %s44, 1
        %s199 = smul.addr %s198, 32
        %s200 = scalar_lea.vmem [#allocation2], %s199
        %p201 = pneg %p57
        %p202 = pneg %p54
        %s203 = sand.u32 %s72, 1
        %s204 = scalar_lea.sflag [#allocation6], %s203
        %s205 = sand.u32 %s72, 1
        %s206 = smul.addr %s205, 8
        %s207 = scalar_lea.vmem [#allocation5], %s206
        %p208 = pneg %p85
        %p209 = pneg %p82
        %p210 = pneg %p111
        %p211 = pneg %p108
        %s212 = sand.u32 %s98, 1
        %s213 = scalar_lea.sflag [#allocation4], %s212
        %s214 = sand.u32 %s98, 1
        %s215 = smul.addr %s214, 96
        %s216 = scalar_lea.vmem [#allocation7], %s215
        %p217 = scmp.eq.s32.totalorder %s27, 0
        // Predicated region
        $region37: #{tpu_custom_call.1} parent=27 // pred_check
          %p218 = pneg %p217
        $region38: #{tpu_custom_call.1} parent=27 // pred_check_branch
          %220 = sbr.rel (%p218) target = $region40
        $region39: #{tpu_custom_call.1} parent=27 // pred_region
          %221 = vst [vmem:[%s216] sm:$0xff] 0.0
          %222 = vst [vmem:[%s216 + $0x8] sm:$0xff] 0.0
          %223 = vst [vmem:[%s216 + $0x10] sm:$0xff] 0.0
          %224 = vst [vmem:[%s216 + $0x18] sm:$0xff] 0.0
          %225 = vst [vmem:[%s216 + $0x20] sm:$0xff] 0.0
          %226 = vst [vmem:[%s216 + $0x28] sm:$0xff] 0.0
          %227 = vst [vmem:[%s216 + $0x30] sm:$0xff] 0.0
          %228 = vst [vmem:[%s216 + $0x38] sm:$0xff] 0.0
          %229 = vst [vmem:[%s216 + $0x40] sm:$0xff] 0.0
          %230 = vst [vmem:[%s216 + $0x48] sm:$0xff] 0.0
          %231 = vst [vmem:[%s216 + $0x50] sm:$0xff] 0.0
          %232 = vst [vmem:[%s216 + $0x58] sm:$0xff] 0.0
        $region40: #{tpu_custom_call.1} parent=27 // pred_fallthru
          _
        %v233 = vld [vmem:[%s182] sm:$0xff]
        %v234 = vld [vmem:[%s182 + $0x8] sm:$0xff]
        %v235 = vld [vmem:[%s182 + $0x10] sm:$0xff]
        %v236 = vld [vmem:[%s182 + $0x18] sm:$0xff]
        %v237 = vld [vmem:[%s191] sm:$0xff]
        %v238 = vmax.f32 %v233, %v234
        %v239 = vmax.f32 %v235, %v236
        %v240 = vmax.f32 %v238, %v239
        %v241 = vsub.f32 %v233, %v240
        %v242 = vsub.f32 %v234, %v240
        %v243 = vsub.f32 %v235, %v240
        %v244 = vsub.f32 %v236, %v240
        %v245 = vmul.f32 %v241, 1.442695
        %v246 = vpow.pop %v245
        %v247 = vmul.f32 %v242, 1.442695
        %v248 = vpow.pop %v247
        %v249 = vmul.f32 %v243, 1.442695
        %v250 = vpow.pop %v249
        %v251 = vmul.f32 %v244, 1.442695
        %v252 = vpow.pop %v251
        %v253 = vadd.f32 %v246, %v248
        %v254 = vadd.f32 %v253, %v250
        %v255 = vadd.f32 %v254, %v252
        %v256 = vrcp.pop %v255
        %v257 = vmul.f32 1.0, %v256
        %v258 = vmul.f32 %v246, %v257
        %v259 = vmul.f32 %v248, %v257
        %v260 = vmul.f32 %v250, %v257
        %v261 = vmul.f32 %v252, %v257
        %vm262 = vcmp.ge.s32.totalorder %v237, 0
        %v263 = vsel %vm262, 1, 0
        %v264 = vcvt.s32.f32 %v263
        %v265 = vmul.f32 %v258, %v264
        %v266 = vmul.f32 %v259, %v264
        %v267 = vmul.f32 %v260, %v264
        %v268 = vmul.f32 %v261, %v264
        %vm269 = vcmp.eq.s32.totalorder %v237, 0
        %v270 = vsel %vm269, 1, 0
        %v271 = vcvt.s32.f32 %v270
        %v272 = vld [vmem:[%s216] sm:$0xff]
        %v273 = vmul.f32 %v265, %v271
        %v274 = vadd.f32 %v273, 0.0
        %v275 = vadd.f32 %v272, %v274
        %276 = vst [vmem:[%s216] sm:$0xff] %v275
        %s277 = scalar_lea.vmem %s216, 32 [#allocation7]
        %v278 = vld [vmem:[%s277] sm:$0xff]
        %v279 = vadd.f32 %v271, 0.0
        %v280 = vadd.f32 %v278, %v279
        %281 = vst [vmem:[%s277] sm:$0xff] %v280
        %s282 = scalar_lea.vmem %s216, 64 [#allocation7]
        %v283 = vld [vmem:[%s282] sm:$0xff]
        %v284 = vmul.f32 %v265, %v265
        %v285 = vadd.f32 %v284, 0.0
        %v286 = vadd.f32 %v283, %v285
        %287 = vst [vmem:[%s282] sm:$0xff] %v286
        %vm288 = vcmp.eq.s32.totalorder %v237, 1
        %v289 = vsel %vm288, 1, 0
        %v290 = vcvt.s32.f32 %v289
        %s291 = scalar_lea.vmem %s216, 8 [#allocation7]
        %v292 = vld [vmem:[%s291] sm:$0xff]
        %v293 = vmul.f32 %v266, %v290
        %v294 = vadd.f32 %v293, 0.0
        %v295 = vadd.f32 %v292, %v294
        %296 = vst [vmem:[%s291] sm:$0xff] %v295
        %s297 = scalar_lea.vmem %s216, 40 [#allocation7]
        %v298 = vld [vmem:[%s297] sm:$0xff]
        %v299 = vadd.f32 %v290, 0.0
        %v300 = vadd.f32 %v298, %v299
        %301 = vst [vmem:[%s297] sm:$0xff] %v300
        %s302 = scalar_lea.vmem %s216, 72 [#allocation7]
        %v303 = vld [vmem:[%s302] sm:$0xff]
        %v304 = vmul.f32 %v266, %v266
        %v305 = vadd.f32 %v304, 0.0
        %v306 = vadd.f32 %v303, %v305
        %307 = vst [vmem:[%s302] sm:$0xff] %v306
        %vm308 = vcmp.eq.s32.totalorder %v237, 2
        %v309 = vsel %vm308, 1, 0
        %v310 = vcvt.s32.f32 %v309
        %s311 = scalar_lea.vmem %s216, 16 [#allocation7]
        %v312 = vld [vmem:[%s311] sm:$0xff]
        %v313 = vmul.f32 %v267, %v310
        %v314 = vadd.f32 %v313, 0.0
        %v315 = vadd.f32 %v312, %v314
        %316 = vst [vmem:[%s311] sm:$0xff] %v315
        %s317 = scalar_lea.vmem %s216, 48 [#allocation7]
        %v318 = vld [vmem:[%s317] sm:$0xff]
        %v319 = vadd.f32 %v310, 0.0
        %v320 = vadd.f32 %v318, %v319
        %321 = vst [vmem:[%s317] sm:$0xff] %v320
        %s322 = scalar_lea.vmem %s216, 80 [#allocation7]
        %v323 = vld [vmem:[%s322] sm:$0xff]
        %v324 = vmul.f32 %v267, %v267
        %v325 = vadd.f32 %v324, 0.0
        %v326 = vadd.f32 %v323, %v325
        %327 = vst [vmem:[%s322] sm:$0xff] %v326
        %vm328 = vcmp.eq.s32.totalorder %v237, 3
        %v329 = vsel %vm328, 1, 0
        %v330 = vcvt.s32.f32 %v329
        %s331 = scalar_lea.vmem %s216, 24 [#allocation7]
        %v332 = vld [vmem:[%s331] sm:$0xff]
        %v333 = vmul.f32 %v268, %v330
        %v334 = vadd.f32 %v333, 0.0
        %v335 = vadd.f32 %v332, %v334
        %336 = vst [vmem:[%s331] sm:$0xff] %v335
        %s337 = scalar_lea.vmem %s216, 56 [#allocation7]
        %v338 = vld [vmem:[%s337] sm:$0xff]
        %v339 = vadd.f32 %v330, 0.0
        %v340 = vadd.f32 %v338, %v339
        %341 = vst [vmem:[%s337] sm:$0xff] %v340
        %s342 = scalar_lea.vmem %s216, 88 [#allocation7]
        %v343 = vld [vmem:[%s342] sm:$0xff]
        %v344 = vmul.f32 %v268, %v268
        %v345 = vadd.f32 %v344, 0.0
        %v346 = vadd.f32 %v343, %v345
        %347 = vst [vmem:[%s342] sm:$0xff] %v346
        %s348 = sand.u32 %s98, 1
        %s349 = scalar_lea.sflag [#allocation4], %s348
        %s350 = sand.u32 %s98, 1
        %s351 = smul.addr %s350, 96
        %s352 = scalar_lea.vmem [#allocation7], %s351
        // Predicated region
        $region41: #{tpu_custom_call.1} parent=27 // pred_check
          %p353 = pneg %p108
        $region42: #{tpu_custom_call.1} parent=27 // pred_check_branch
          %355 = sbr.rel (%p353) target = $region44
        $region43: #{tpu_custom_call.1} parent=27 // pred_region
          %s357 = ssub.s32 1536, 1536
          %358 = vsyncadd %s349, %s357
          %s359 = smul.addr %s26, 12
          %s360 = smul.addr %s359, 128
          %s361 = scalar_lea.hbm %s2, %s360
          %s362 = sshll.u32 %s352, 4
          %s363 = int_to_ptr.vmem [resolvable:$true] %s362
          %368 = dma.vmem_to_hbm [thread:$0]  %s363, 1536, %s361, %s349, 128, 128, 8
        $region44: #{tpu_custom_call.1} parent=27 // pred_fallthru
          _
      $region28: #{tpu_custom_call.1} parent=5 // pred_fallthru
        _
      %p369 = scmp.le.s32.totalorder 2, %s17
      // Predicated region
      $region45: #{tpu_custom_call.1} parent=5 // pred_check
        %p370 = pneg %p369
      $region46: #{tpu_custom_call.1} parent=5 // pred_check_branch
        %372 = sbr.rel (%p370) target = $region48
      $region47: #{tpu_custom_call.1} parent=5 // pred_region
        %s373 = ssub.s32 %s17, 2
        // Predicated region
        $region49: #{tpu_custom_call.1} parent=47 // pred_check
          %p374 = pneg %p114
        $region50: #{tpu_custom_call.1} parent=47 // pred_check_branch
          %376 = sbr.rel (%p374) target = $region52
        $region51: #{tpu_custom_call.1} parent=47 // pred_region
          %s377 = sand.u32 %s99, 1
          %s378 = scalar_lea.sflag [#allocation4], %s377
          %s379 = sand.u32 %s99, 1
          %s380 = smul.addr %s379, 96
          %s381 = scalar_lea.vmem [#allocation7], %s380
          %382 = dma.done %s378, 1536
        $region52: #{tpu_custom_call.1} parent=47 // pred_fallthru
          _
      $region48: #{tpu_custom_call.1} parent=5 // pred_fallthru
        _
    $region6: #{tpu_custom_call.1} parent=1 // loop_footer
      %s21 = sadd.s32 1, %s17
    $region7: #{tpu_custom_call.1} parent=1 // loop_footer_branch
      %16 = sbr.rel target = $region3
    $region8: #{tpu_custom_call.1} parent=1 // loop_exit
      _
    %383 = vsyncpa [#allocation3], 1
    %s384 = scalar_lea.sflag [#allocation3], 1
    %385 = vsyncpa %s384, 1
    %386 = vsyncpa [#allocation6], 1
    %s387 = scalar_lea.sflag [#allocation6], 1
    %388 = vsyncpa %s387, 1
    %389 = vsyncpa [#allocation4], 1
    %s390 = scalar_lea.sflag [#allocation4], 1
    %391 = vsyncpa %s390, 1

</llo_original>
